<compile_context>
chip_gen: v7x
topology: tpu7x:2x2x1
jax: 0.10.0
libtpu: 0.0.40
codegen_flags: <defaults>
</compile_context>

<pallas_src>
import functools
from typing import NamedTuple

import jax
import jax.numpy as jnp
from jax.experimental import pallas as pl
from jax.experimental.pallas import tpu as pltpu


def _round_up(x: int, m: int) -> int:
    return ((x + m - 1) // m) * m


class PreparedTables(NamedTuple):
    table: jnp.ndarray      # (vc_pad, E) bf16; rows [0,V) surface, [V,V+P) postag, rest 0
    v_surface: int
    v_postag: int
    tile_v: int


def prepare_morph_tables(surface_table, postag_table, *, tile_v: int = 1024) -> PreparedTables:
    """Stack + bf16-cast + vocab-pad the embedding tables.

    Call ONCE (outside the per-step forward path) and pass the result to
    morph_embedding_forward(prepared=...) -- avoids a full (V+P, E) read/cast/pad
    per forward call.  The table is NOT pre-scaled (scaling is applied to the
    counts inside the kernel), so it does not depend on the input shape.
    """
    V, E = surface_table.shape
    P, E2 = postag_table.shape
    assert E == E2, "surface / postag embedding dims must match"
    vc = V + P
    tile_v = max(32, min(int(tile_v), _round_up(vc, 32)))
    tile_v = _round_up(tile_v, 32)              # bf16 sublane tiling stays clean
    vc_pad = _round_up(vc, tile_v)
    tab = jnp.zeros((vc_pad, E), jnp.float32)
    tab = tab.at[:V].set(surface_table.astype(jnp.float32))
    tab = tab.at[V:vc].set(postag_table.astype(jnp.float32))
    return PreparedTables(table=tab.astype(jnp.bfloat16), v_surface=V,
                          v_postag=P, tile_v=tile_v)


def _morph_kernel(idx_ref, tab_ref, out_ref, *, tile_v: int, chunk_n: int,
                  v_surface: int, surf_scale: float, tag_scale: float):
    """One (batch-tile, vocab-tile) grid step.

    idx_ref : (TB, N_pad)   int32 combined surface+postag indices (resident per batch tile)
    tab_ref : (TILE_V, E)   bf16 unscaled stacked embedding rows (streamed over vocab)
    out_ref : (TB, E)       f32, accumulated across the vocab (reduction) grid axis
    """
    v = pl.program_id(1)

    # Output block is resident across the vocab axis: init once per batch tile.
    @pl.when(v == 0)
    def _init():
        out_ref[...] = jnp.zeros_like(out_ref)

    tb, n_pad = idx_ref.shape
    num_chunks = n_pad // chunk_n
    v_start = v * tile_v

    # Lane-only iota (one vreg); the == broadcasts it across (tb, chunk_n) for free.
    lane_iota = jax.lax.broadcasted_iota(jnp.int32, (1, 1, tile_v), 2)

    def body(c, counts):
        i0 = pl.multiple_of(c * chunk_n, chunk_n)
        idx_chunk = idx_ref[:, pl.ds(i0, chunk_n)] - v_start        # (TB, CHUNK_N)
        hit = idx_chunk[:, :, None] == lane_iota                    # (TB, CHUNK_N, TILE_V)
        # Sum as int32; one conversion per (TB, TILE_V) row, not per element.
        return counts + jnp.sum(hit.astype(jnp.int32), axis=1)

    # Cap the unroll: full unroll only for short loops, otherwise keep 4-wide
    # scheduler visibility without blowing up program size.
    unroll = num_chunks if num_chunks <= 8 else 4
    counts = jax.lax.fori_loop(0, num_chunks, body,
                               jnp.zeros((tb, tile_v), jnp.int32),
                               unroll=unroll)

    # Per-vocab-row scaling moved onto the counts (table stays unscaled/cacheable):
    # surface rows (global id < V) get 0.5/Ns, postag rows get 0.5/Nt.
    gid = jax.lax.broadcasted_iota(jnp.int32, (1, tile_v), 1) + v_start
    scale = jnp.where(gid < v_surface,
                      jnp.float32(surf_scale), jnp.float32(tag_scale))
    scaled = (counts.astype(jnp.float32) * scale).astype(jnp.bfloat16)

    # Single MXU launch per (batch-tile, vocab-tile): scaled histogram @ table.
    out_ref[...] += jnp.dot(scaled, tab_ref[...],
                            preferred_element_type=jnp.float32)


def morph_embedding_forward(input_seq, surface_table=None, postag_table=None, *,
                            prepared: PreparedTables | None = None,
                            tile_v: int = 1024, chunk_n: int = 128,
                            batch_tile: int | None = None):
    if prepared is None:
        prepared = prepare_morph_tables(surface_table, postag_table, tile_v=tile_v)
    tab_p = prepared.table
    V = prepared.v_surface
    vc_pad, E = tab_p.shape

    B, W, M, F = input_seq.shape
    n_surface = W * (M - 1) * F            # number of surface-gathered indices
    n_postag = W * M                       # number of postag-gathered indices
    n = n_surface + n_postag

    # ---- fuse the two embedding streams into one combined index array --------
    surf_idx = input_seq[:, :, :-1, :].reshape(B, n_surface).astype(jnp.int32)
    tag_idx = input_seq[:, :, :, -1].reshape(B, n_postag).astype(jnp.int32) + V
    idx = jnp.concatenate([surf_idx, tag_idx], axis=1)              # (B, N)

    # ---- tile sizing ----------------------------------------------------------
    b_pad = _round_up(B, 8)
    if batch_tile is None:
        # Small batch: one tile (table streamed exactly once).  Larger batch: two
        # tiles so the "parallel" batch axis shards across v7x's two TensorCores
        # while the table is still streamed at most twice.  Capped at 128 rows so
        # the counts carry stays vreg-friendly.
        batch_tile = b_pad if b_pad <= 8 else _round_up((b_pad + 1) // 2, 8)
    batch_tile = max(8, min(_round_up(int(batch_tile), 8), 128))
    b_pad = _round_up(b_pad, batch_tile)
    num_batch_tiles = b_pad // batch_tile

    # Bound the (batch_tile, tile_v) int32 counts loop-carry to <= ~64 KiB.
    tile_v_eff = prepared.tile_v
    counts_budget = max(128, (64 * 1024 // 4) // batch_tile)
    while tile_v_eff > counts_budget and tile_v_eff % 2 == 0:
        tile_v_eff //= 2
    assert vc_pad % tile_v_eff == 0

    # Bound the transient (batch_tile, chunk_n, tile_v) compare slab to ~1 MiB.
    slab_budget_elems = 256 * 1024
    chunk_n_eff = min(int(chunk_n),
                      max(8, (slab_budget_elems // (batch_tile * tile_v_eff)) // 8 * 8))
    n_pad = _round_up(n, chunk_n_eff)

    idx_p = jnp.full((b_pad, n_pad), -1, jnp.int32).at[:B, :n].set(idx)

    grid = (num_batch_tiles, vc_pad // tile_v_eff)
    kernel = functools.partial(_morph_kernel, tile_v=tile_v_eff, chunk_n=chunk_n_eff,
                               v_surface=V,
                               surf_scale=0.5 / n_surface, tag_scale=0.5 / n_postag)

    # Right-size the VMEM request from the actual footprint (double-buffered
    # streamed table tile + resident idx/out blocks + compare slab + counts).
    tab_tile_bytes = tile_v_eff * E * 2
    idx_bytes = batch_tile * n_pad * 4
    out_bytes = batch_tile * E * 4
    slab_bytes = batch_tile * chunk_n_eff * tile_v_eff * 4
    counts_bytes = batch_tile * tile_v_eff * 4
    vmem_est = 2 * (tab_tile_bytes + idx_bytes + out_bytes) + 2 * slab_bytes + 4 * counts_bytes
    vmem_limit = int(min(32 << 20, max(8 << 20, 2 * vmem_est)))

    cost = pl.CostEstimate(
        flops=b_pad * n_pad * vc_pad + 2 * b_pad * vc_pad * E,
        transcendentals=0,
        # Table is re-streamed once per batch tile; sizes use the unpadded E.
        bytes_accessed=int(tab_p.size) * 2 * num_batch_tiles
                       + b_pad * n_pad * 4 + b_pad * E * 4,
    )

    out = pl.pallas_call(
        kernel,
        out_shape=jax.ShapeDtypeStruct((b_pad, E), jnp.float32),
        grid_spec=pltpu.PrefetchScalarGridSpec(
            num_scalar_prefetch=0,
            grid=grid,
            in_specs=[
                # combined indices: resident per batch tile
                pl.BlockSpec((batch_tile, n_pad), lambda b, v: (b, 0)),
                # table tile: streamed over the vocab axis (double-buffered);
                # last dim == full array dim (E), so no padding to 128 needed.
                pl.BlockSpec((tile_v_eff, E), lambda b, v: (v, 0)),
            ],
            out_specs=pl.BlockSpec((batch_tile, E), lambda b, v: (b, 0)),
        ),
        compiler_params=pltpu.CompilerParams(
            dimension_semantics=("parallel", "arbitrary"),
            vmem_limit_bytes=vmem_limit,
        ),
        cost_estimate=cost,
    )(idx_p, tab_p)

    return out[:B]


def morph_embedding_reference(input_seq, surface_table, postag_table):
    """Faithful f32 forward (matches the PyTorch module)."""
    surf = surface_table[input_seq[:, :, :-1, :]]          # (B, W, M-1, F, E)
    surf_emb = surf.mean(axis=(1, 2, 3))                   # (B, E)
    tag = postag_table[input_seq[:, :, :, -1]]             # (B, W, M, E)
    tag_emb = tag.mean(axis=(1, 2))                        # (B, E)
    return jnp.stack([surf_emb, tag_emb]).mean(axis=0)     # (B, E)


def bf16_consistent_reference(input_seq, surface_table, postag_table):
    """Same math as the kernel in plain JAX: integer histogram, per-vocab-row f32
    scaling rounded to bf16, matmul against the unscaled bf16 table, f32 accum."""
    B, W, M, F = input_seq.shape
    V, E = surface_table.shape
    P = postag_table.shape[0]
    n_surface = W * (M - 1) * F
    n_postag = W * M
    surf_idx = input_seq[:, :, :-1, :].reshape(B, n_surface)
    tag_idx = input_seq[:, :, :, -1].reshape(B, n_postag) + V
    idx = jnp.concatenate([surf_idx, tag_idx], axis=1)
    counts = (idx[:, :, None] == jnp.arange(V + P)[None, None, :]).sum(axis=1)
    scale = jnp.where(jnp.arange(V + P) < V, 0.5 / n_surface, 0.5 / n_postag)
    scaled = (counts.astype(jnp.float32) * scale).astype(jnp.bfloat16).astype(jnp.float32)
    tab = jnp.concatenate([surface_table, postag_table], axis=0)
    tab = tab.astype(jnp.bfloat16).astype(jnp.float32)
    return jnp.dot(scaled, tab, precision=jax.lax.Precision.HIGHEST)


if __name__ == "__main__":
    key = jax.random.PRNGKey(0)
    k_surf, k_tag, k_idx, k_pidx = jax.random.split(key, 4)

    B, W, M, F = 2, 4, 4, 4      # batch, words, morphemes/analyses, fields
    E = 32                       # embedding dim
    V_SURF = 64                  # surface/token vocab size
    V_TAG = 16                   # postag vocab size

    surface_table = jax.random.normal(k_surf, (V_SURF, E), dtype=jnp.float32)
    postag_table = jax.random.normal(k_tag, (V_TAG, E), dtype=jnp.float32)

    # Fields 0..F-2 hold surface-vocab ids; last field holds postag-vocab ids.
    surf_fields = jax.random.randint(k_idx, (B, W, M, F - 1), 0, V_SURF, dtype=jnp.int32)
    tag_field = jax.random.randint(k_pidx, (B, W, M, 1), 0, V_TAG, dtype=jnp.int32)
    input_seq = jnp.concatenate([surf_fields, tag_field], axis=-1)

    # Hoisted / cached table prep (done once, reused across forward calls).
    prepared = prepare_morph_tables(surface_table, postag_table)

    out = jax.block_until_ready(
        morph_embedding_forward(input_seq, prepared=prepared))
    assert out.shape == (B, E)

    # Tight check: identical math (bf16 tables + bf16 scaled counts) in plain JAX.
    ref_tight = bf16_consistent_reference(input_seq, surface_table, postag_table)
    assert jnp.allclose(out, ref_tight, atol=1e-4, rtol=1e-3), \
        "Pallas kernel mismatch vs bf16-consistent reference"

    # Semantic check vs the faithful f32 forward (only bf16 rounding differs).
    ref_f32 = morph_embedding_reference(input_seq, surface_table, postag_table)
    assert jnp.allclose(out, ref_f32, atol=3e-2, rtol=3e-2), \
        "Pallas kernel mismatch vs f32 reference"

    # Second config: exercises multiple batch tiles (B_pad=16 -> 2 tiles of 8 ->
    # the "parallel" axis can use both v7x TensorCores), multiple vocab tiles
    # (3 tiles of 32) and more than one index chunk (N=152 -> 2 chunks of 128),
    # plus the prepare-inside-forward path.
    B2, W2, M2, F2 = 10, 8, 4, 5
    k2 = jax.random.split(jax.random.PRNGKey(1), 2)
    surf2 = jax.random.randint(k2[0], (B2, W2, M2, F2 - 1), 0, V_SURF, dtype=jnp.int32)
    tag2 = jax.random.randint(k2[1], (B2, W2, M2, 1), 0, V_TAG, dtype=jnp.int32)
    input_seq2 = jnp.concatenate([surf2, tag2], axis=-1)
    out2 = jax.block_until_ready(
        morph_embedding_forward(input_seq2, surface_table, postag_table, tile_v=32))
    ref2 = bf16_consistent_reference(input_seq2, surface_table, postag_table)
    assert out2.shape == (B2, E)
    assert jnp.allclose(out2, ref2, atol=1e-4, rtol=1e-3), \
        "Pallas kernel mismatch (tiled config) vs bf16-consistent reference"

    print("KERNEL_OK")
</pallas_src>

<mosaic_0001>
module attributes {stable_mosaic.version = 11 : i64} {
  func.func @_morph_kernel(%arg0: i32, %arg1: i32, %arg2: memref<8x128xi32, #tpu.memory_space<vmem>>, %arg3: memref<96x32xbf16, #tpu.memory_space<vmem>>, %arg4: memref<8x32xf32, #tpu.memory_space<vmem>>) attributes {dimension_semantics = [#tpu.dimension_semantics<parallel>, #tpu.dimension_semantics<arbitrary>], iteration_bounds = array<i64: 1, 1>, scalar_prefetch = 0 : i64, scratch_operands = 0 : i64, tpu.core_type = #tpu.core_type<tc>, window_params = [{transform_indices = @transform_0, window_bounds = array<i64: 8, 128>}, {transform_indices = @transform_1, window_bounds = array<i64: 96, 32>}, {transform_indices = @transform_2, window_bounds = array<i64: 8, 32>}]} {
    %c0_i32 = arith.constant 0 : i32
    %0 = arith.cmpi eq, %arg1, %c0_i32 : i32
    %1 = arith.extui %0 : i1 to i32
    %c0_i32_0 = arith.constant 0 : i32
    %2 = arith.cmpi ne, %1, %c0_i32_0 : i32
    scf.if %2 {
      %cst_12 = arith.constant 0.000000e+00 : f32
      %36 = vector.broadcast %cst_12 : f32 to vector<8x32xf32>
      %c0_13 = arith.constant 0 : index
      %c0_14 = arith.constant 0 : index
      %37 = vector.load %arg4[%c0_13, %c0_14] : memref<8x32xf32, #tpu.memory_space<vmem>>, vector<8x32xf32>
      tpu.vector_store %arg4[%c0_13, %c0_14], %36 {strides = array<i32>} : memref<8x32xf32, #tpu.memory_space<vmem>>, vector<8x32xf32>,
    } else {
    }
    %c96_i32 = arith.constant 96 : i32
    %3 = arith.muli %arg1, %c96_i32 : i32
    %4 = tpu.iota {dimensions = array<i32: 2>} : vector<1x1x96xi32>
    %c0_i32_1 = arith.constant 0 : i32
    %5 = vector.broadcast %c0_i32_1 : i32 to vector<8x96xi32>
    %c0_i32_2 = arith.constant 0 : i32
    %c128_i32 = arith.constant 128 : i32
    %6 = arith.muli %c0_i32_2, %c128_i32 : i32
    %7 = tpu.assume_multiple %6, 128 : i32
    %c0 = arith.constant 0 : index
    %8 = arith.index_cast %7 : i32 to index
    %9 = vector.load %arg2[%c0, %8] : memref<8x128xi32, #tpu.memory_space<vmem>>, vector<8x128xi32>
    %10 = vector.broadcast %3 : i32 to vector<8x128xi32>
    %11 = arith.subi %9, %10 : vector<8x128xi32>
    %12 = vector.shape_cast %11 : vector<8x128xi32> to vector<8x128x1xi32>
    %13 = vector.broadcast %12 : vector<8x128x1xi32> to vector<8x128x96xi32>
    %14 = vector.broadcast %4 : vector<1x1x96xi32> to vector<8x128x96xi32>
    %15 = arith.cmpi eq, %13, %14 : vector<8x128x96xi32>
    %16 = arith.extui %15 : vector<8x128x96xi1> to vector<8x128x96xi32>
    %cst = arith.constant dense<0> : vector<8x96xi32>
    %17 = vector.multi_reduction <add>, %16, %cst [1] : vector<8x128x96xi32> to vector<8x96xi32>
    %18 = arith.addi %5, %17 : vector<8x96xi32>
    %c1_i32 = arith.constant 1 : i32
    %19 = tpu.iota {dimensions = array<i32: 1>} : vector<1x96xi32>
    %20 = vector.broadcast %3 : i32 to vector<1x96xi32>
    %21 = arith.addi %19, %20 : vector<1x96xi32>
    %c64_i32 = arith.constant 64 : i32
    %22 = vector.broadcast %c64_i32 : i32 to vector<1x96xi32>
    %23 = arith.cmpi slt, %21, %22 : vector<1x96xi32>
    %cst_3 = arith.constant 0.010416667 : f32
    %cst_4 = arith.constant 3.125000e-02 : f32
    %24 = vector.broadcast %cst_3 : f32 to vector<1x96xf32>
    %25 = vector.broadcast %cst_4 : f32 to vector<1x96xf32>
    %26 = arith.select %23, %24, %25 : vector<1x96xi1>, vector<1x96xf32>
    %27 = arith.sitofp %18 : vector<8x96xi32> to vector<8x96xf32>
    %28 = vector.broadcast %26 : vector<1x96xf32> to vector<8x96xf32>
    %29 = arith.mulf %27, %28 : vector<8x96xf32>
    %30 = arith.truncf %29 : vector<8x96xf32> to vector<8x96xbf16>
    %c0_5 = arith.constant 0 : index
    %c0_6 = arith.constant 0 : index
    %31 = vector.load %arg4[%c0_5, %c0_6] : memref<8x32xf32, #tpu.memory_space<vmem>>, vector<8x32xf32>
    %c0_7 = arith.constant 0 : index
    %c0_8 = arith.constant 0 : index
    %32 = vector.load %arg3[%c0_7, %c0_8] : memref<96x32xbf16, #tpu.memory_space<vmem>>, vector<96x32xbf16>
    %cst_9 = arith.constant dense<0.000000e+00> : vector<8x32xf32>
    %33 = tpu.matmul %30, %32, %cst_9 {dimension_numbers = #tpu.dot_dimension_numbers<[1], [0], [0], [1], [0, 0, 1, 1], [], []>} : vector<8x96xbf16>, vector<96x32xbf16>, vector<8x32xf32> -> vector<8x32xf32>
    %34 = arith.addf %31, %33 : vector<8x32xf32>
    %c0_10 = arith.constant 0 : index
    %c0_11 = arith.constant 0 : index
    %35 = vector.load %arg4[%c0_10, %c0_11] : memref<8x32xf32, #tpu.memory_space<vmem>>, vector<8x32xf32>
    tpu.vector_store %arg4[%c0_10, %c0_11], %34 {strides = array<i32>} : memref<8x32xf32, #tpu.memory_space<vmem>>, vector<8x32xf32>,
    return
  }
  func.func @transform_0(%arg0: i32, %arg1: i32) -> (i32, i32) {
    %c0_i32 = arith.constant 0 : i32
    %c0_i32_0 = arith.constant 0 : i32
    return %arg0, %c0_i32 : i32, i32
  }
  func.func @transform_1(%arg0: i32, %arg1: i32) -> (i32, i32) {
    %c0_i32 = arith.constant 0 : i32
    %c0_i32_0 = arith.constant 0 : i32
    return %arg1, %c0_i32 : i32, i32
  }
  func.func @transform_2(%arg0: i32, %arg1: i32) -> (i32, i32) {
    %c0_i32 = arith.constant 0 : i32
    %c0_i32_0 = arith.constant 0 : i32
    return %arg0, %c0_i32 : i32, i32
  }
}

</mosaic_0001>

<llo_original>
// kernel: tpu_custom_call.1
$region0: #{tpu_custom_call.1}
  #allocation0 [shape = 'u32[]', space=smem, size = 0x4, offset = 0x4, fixed_abs, tag = 'smem constant byte address 0x4 - core index']
  #allocation1 [shape = 'u32[144,128]{1,0:T(1,128)}', space=vmem, size = 0x12000, scoped, tag = 'internal scratch']
  %s0 = inlined_call_operand.vmem [shape: s32[8,128], index: 0, kind: input, shape index: {}]
  %s1 = inlined_call_operand.vmem [shape: bf16[96,32], index: 1, kind: input, shape index: {}]
  %s2 = inlined_call_operand.hbm [shape: f32[8,32], index: 2, kind: output, shape index: {}]
  %s3 = sld [smem:[#allocation0]]
  $region22: #{tpu_custom_call.1} parent=0
    _
  %s5 = ssub.s32 1, %s3
  %s6 = scalar_select 0, %s5, %s3
  $region1: #{tpu_custom_call.1} parent=0
    #allocation2 [shape = 'u8[4096]{0}', space=vmem, size = 0x1000, scoped, tag = 'output window, operand 0, single buffered']
    #allocation3 [shape = 's32[1]{0}', space=sflag, size = 0x4, scoped, tag = 'scoped memory for tpu_custom_call.1']
    %7 = vsyncpa [#allocation3], 0
    // Predicated region
    $region2: #{tpu_custom_call.1} parent=1 // pred_check
      _
    $region3: #{tpu_custom_call.1} parent=1 // pred_check_branch
      %9 = sbr.rel (0) target = $region5
    $region4: #{tpu_custom_call.1} parent=1 // pred_region
      _
    $region5: #{tpu_custom_call.1} parent=1 // pred_fallthru
      _
    // Predicated region
    $region6: #{tpu_custom_call.1} parent=1 // pred_check
      _
    $region7: #{tpu_custom_call.1} parent=1 // pred_check_branch
      %11 = sbr.rel (0) target = $region9
    $region8: #{tpu_custom_call.1} parent=1 // pred_region
      _
    $region9: #{tpu_custom_call.1} parent=1 // pred_fallthru
      _
    %p13 = scmp.eq.s32.totalorder 0, 0
    // Predicated region
    $region10: #{tpu_custom_call.1} parent=1 // pred_check
      %p14 = pneg %p13
    $region11: #{tpu_custom_call.1} parent=1 // pred_check_branch
      %16 = sbr.rel (%p14) target = $region13
    $region12: #{tpu_custom_call.1} parent=1 // pred_region
      %vm17 = vcmask 261120
      %18 = vst.msk [vmem:[#allocation2] sm:$0xff] %vm17, 0.0
    $region13: #{tpu_custom_call.1} parent=1 // pred_fallthru
      _
    %s19 = smul.u32 0, 96
    %v20 = vlaneseq
    %v21 = vand.u32 %v20, 127
    %v22 = vld [vmem:[%s0] sm:$0xff]
    %v23 = vstv %s19
    %v24 = vsub.s32 %v22, %v23
    %v25 = vlaneseq
    %v26 = vshrl.u32 %v25, 7
    %v27 = vsub.s32 0, %v26
    %v28 = vrot.slane %v24, %v27
    %30 = vbcast.lane.b32.xlu0 %v28, 256
    %v31 = vpop.permute.xlu0 %30
    %s33 = sor.u32 256, 8
    %34 = vbcast.lane.b32.xlu0 %v28, %s33
    %v35 = vpop.permute.xlu0 %34
    %s37 = sor.u32 256, 16
    %38 = vbcast.lane.b32.xlu0 %v28, %s37
    %v39 = vpop.permute.xlu0 %38
    %s41 = sor.u32 256, 24
    %42 = vbcast.lane.b32.xlu0 %v28, %s41
    %v43 = vpop.permute.xlu0 %42
    %s45 = sor.u32 256, 32
    %46 = vbcast.lane.b32.xlu0 %v28, %s45
    %v47 = vpop.permute.xlu0 %46
    %s49 = sor.u32 256, 40
    %50 = vbcast.lane.b32.xlu0 %v28, %s49
    %v51 = vpop.permute.xlu0 %50
    %s53 = sor.u32 256, 48
    %54 = vbcast.lane.b32.xlu0 %v28, %s53
    %v55 = vpop.permute.xlu0 %54
    %s57 = sor.u32 256, 56
    %58 = vbcast.lane.b32.xlu0 %v28, %s57
    %v59 = vpop.permute.xlu0 %58
    %s61 = sor.u32 256, 64
    %62 = vbcast.lane.b32.xlu0 %v28, %s61
    %v63 = vpop.permute.xlu0 %62
    %s65 = sor.u32 256, 72
    %66 = vbcast.lane.b32.xlu0 %v28, %s65
    %v67 = vpop.permute.xlu0 %66
    %s69 = sor.u32 256, 80
    %70 = vbcast.lane.b32.xlu0 %v28, %s69
    %v71 = vpop.permute.xlu0 %70
    %s73 = sor.u32 256, 88
    %74 = vbcast.lane.b32.xlu0 %v28, %s73
    %v75 = vpop.permute.xlu0 %74
    %s77 = sor.u32 256, 96
    %78 = vbcast.lane.b32.xlu0 %v28, %s77
    %v79 = vpop.permute.xlu0 %78
    %s81 = sor.u32 256, 104
    %82 = vbcast.lane.b32.xlu0 %v28, %s81
    %v83 = vpop.permute.xlu0 %82
    %s85 = sor.u32 256, 112
    %86 = vbcast.lane.b32.xlu0 %v28, %s85
    %v87 = vpop.permute.xlu0 %86
    %s89 = sor.u32 256, 120
    %90 = vbcast.lane.b32.xlu0 %v28, %s89
    %v91 = vpop.permute.xlu0 %90
    %v92 = vlaneseq
    %v93 = vshrl.u32 %v92, 7
    %v94 = vsub.s32 1, %v93
    %v95 = vrot.slane %v24, %v94
    %97 = vbcast.lane.b32.xlu0 %v95, 256
    %v98 = vpop.permute.xlu0 %97
    %s100 = sor.u32 256, 8
    %101 = vbcast.lane.b32.xlu0 %v95, %s100
    %v102 = vpop.permute.xlu0 %101
    %s104 = sor.u32 256, 16
    %105 = vbcast.lane.b32.xlu0 %v95, %s104
    %v106 = vpop.permute.xlu0 %105
    %s108 = sor.u32 256, 24
    %109 = vbcast.lane.b32.xlu0 %v95, %s108
    %v110 = vpop.permute.xlu0 %109
    %s112 = sor.u32 256, 32
    %113 = vbcast.lane.b32.xlu0 %v95, %s112
    %v114 = vpop.permute.xlu0 %113
    %s116 = sor.u32 256, 40
    %117 = vbcast.lane.b32.xlu0 %v95, %s116
    %v118 = vpop.permute.xlu0 %117
    %s120 = sor.u32 256, 48
    %121 = vbcast.lane.b32.xlu0 %v95, %s120
    %v122 = vpop.permute.xlu0 %121
    %s124 = sor.u32 256, 56
    %125 = vbcast.lane.b32.xlu0 %v95, %s124
    %v126 = vpop.permute.xlu0 %125
    %s128 = sor.u32 256, 64
    %129 = vbcast.lane.b32.xlu0 %v95, %s128
    %v130 = vpop.permute.xlu0 %129
    %s132 = sor.u32 256, 72
    %133 = vbcast.lane.b32.xlu0 %v95, %s132
    %v134 = vpop.permute.xlu0 %133
    %s136 = sor.u32 256, 80
    %137 = vbcast.lane.b32.xlu0 %v95, %s136
    %v138 = vpop.permute.xlu0 %137
    %s140 = sor.u32 256, 88
    %141 = vbcast.lane.b32.xlu0 %v95, %s140
    %v142 = vpop.permute.xlu0 %141
    %s144 = sor.u32 256, 96
    %145 = vbcast.lane.b32.xlu0 %v95, %s144
    %v146 = vpop.permute.xlu0 %145
    %s148 = sor.u32 256, 104
    %149 = vbcast.lane.b32.xlu0 %v95, %s148
    %v150 = vpop.permute.xlu0 %149
    %s152 = sor.u32 256, 112
    %153 = vbcast.lane.b32.xlu0 %v95, %s152
    %v154 = vpop.permute.xlu0 %153
    %s156 = sor.u32 256, 120
    %157 = vbcast.lane.b32.xlu0 %v95, %s156
    %v158 = vpop.permute.xlu0 %157
    %v159 = vlaneseq
    %v160 = vshrl.u32 %v159, 7
    %v161 = vsub.s32 2, %v160
    %v162 = vrot.slane %v24, %v161
    %164 = vbcast.lane.b32.xlu0 %v162, 256
    %v165 = vpop.permute.xlu0 %164
    %s167 = sor.u32 256, 8
    %168 = vbcast.lane.b32.xlu0 %v162, %s167
    %v169 = vpop.permute.xlu0 %168
    %s171 = sor.u32 256, 16
    %172 = vbcast.lane.b32.xlu0 %v162, %s171
    %v173 = vpop.permute.xlu0 %172
    %s175 = sor.u32 256, 24
    %176 = vbcast.lane.b32.xlu0 %v162, %s175
    %v177 = vpop.permute.xlu0 %176
    %s179 = sor.u32 256, 32
    %180 = vbcast.lane.b32.xlu0 %v162, %s179
    %v181 = vpop.permute.xlu0 %180
    %s183 = sor.u32 256, 40
    %184 = vbcast.lane.b32.xlu0 %v162, %s183
    %v185 = vpop.permute.xlu0 %184
    %s187 = sor.u32 256, 48
    %188 = vbcast.lane.b32.xlu0 %v162, %s187
    %v189 = vpop.permute.xlu0 %188
    %s191 = sor.u32 256, 56
    %192 = vbcast.lane.b32.xlu0 %v162, %s191
    %v193 = vpop.permute.xlu0 %192
    %s195 = sor.u32 256, 64
    %196 = vbcast.lane.b32.xlu0 %v162, %s195
    %v197 = vpop.permute.xlu0 %196
    %s199 = sor.u32 256, 72
    %200 = vbcast.lane.b32.xlu0 %v162, %s199
    %v201 = vpop.permute.xlu0 %200
    %s203 = sor.u32 256, 80
    %204 = vbcast.lane.b32.xlu0 %v162, %s203
    %v205 = vpop.permute.xlu0 %204
    %s207 = sor.u32 256, 88
    %208 = vbcast.lane.b32.xlu0 %v162, %s207
    %v209 = vpop.permute.xlu0 %208
    %s211 = sor.u32 256, 96
    %212 = vbcast.lane.b32.xlu0 %v162, %s211
    %v213 = vpop.permute.xlu0 %212
    %s215 = sor.u32 256, 104
    %216 = vbcast.lane.b32.xlu0 %v162, %s215
    %v217 = vpop.permute.xlu0 %216
    %s219 = sor.u32 256, 112
    %220 = vbcast.lane.b32.xlu0 %v162, %s219
    %v221 = vpop.permute.xlu0 %220
    %s223 = sor.u32 256, 120
    %224 = vbcast.lane.b32.xlu0 %v162, %s223
    %v225 = vpop.permute.xlu0 %224
    %v226 = vlaneseq
    %v227 = vshrl.u32 %v226, 7
    %v228 = vsub.s32 3, %v227
    %v229 = vrot.slane %v24, %v228
    %231 = vbcast.lane.b32.xlu0 %v229, 256
    %v232 = vpop.permute.xlu0 %231
    %s234 = sor.u32 256, 8
    %235 = vbcast.lane.b32.xlu0 %v229, %s234
    %v236 = vpop.permute.xlu0 %235
    %s238 = sor.u32 256, 16
    %239 = vbcast.lane.b32.xlu0 %v229, %s238
    %v240 = vpop.permute.xlu0 %239
    %s242 = sor.u32 256, 24
    %243 = vbcast.lane.b32.xlu0 %v229, %s242
    %v244 = vpop.permute.xlu0 %243
    %s246 = sor.u32 256, 32
    %247 = vbcast.lane.b32.xlu0 %v229, %s246
    %v248 = vpop.permute.xlu0 %247
    %s250 = sor.u32 256, 40
    %251 = vbcast.lane.b32.xlu0 %v229, %s250
    %v252 = vpop.permute.xlu0 %251
    %s254 = sor.u32 256, 48
    %255 = vbcast.lane.b32.xlu0 %v229, %s254
    %v256 = vpop.permute.xlu0 %255
    %s258 = sor.u32 256, 56
    %259 = vbcast.lane.b32.xlu0 %v229, %s258
    %v260 = vpop.permute.xlu0 %259
    %s262 = sor.u32 256, 64
    %263 = vbcast.lane.b32.xlu0 %v229, %s262
    %v264 = vpop.permute.xlu0 %263
    %s266 = sor.u32 256, 72
    %267 = vbcast.lane.b32.xlu0 %v229, %s266
    %v268 = vpop.permute.xlu0 %267
    %s270 = sor.u32 256, 80
    %271 = vbcast.lane.b32.xlu0 %v229, %s270
    %v272 = vpop.permute.xlu0 %271
    %s274 = sor.u32 256, 88
    %275 = vbcast.lane.b32.xlu0 %v229, %s274
    %v276 = vpop.permute.xlu0 %275
    %s278 = sor.u32 256, 96
    %279 = vbcast.lane.b32.xlu0 %v229, %s278
    %v280 = vpop.permute.xlu0 %279
    %s282 = sor.u32 256, 104
    %283 = vbcast.lane.b32.xlu0 %v229, %s282
    %v284 = vpop.permute.xlu0 %283
    %s286 = sor.u32 256, 112
    %287 = vbcast.lane.b32.xlu0 %v229, %s286
    %v288 = vpop.permute.xlu0 %287
    %s290 = sor.u32 256, 120
    %291 = vbcast.lane.b32.xlu0 %v229, %s290
    %v292 = vpop.permute.xlu0 %291
    %v293 = vlaneseq
    %v294 = vshrl.u32 %v293, 7
    %v295 = vsub.s32 4, %v294
    %v296 = vrot.slane %v24, %v295
    %298 = vbcast.lane.b32.xlu0 %v296, 256
    %v299 = vpop.permute.xlu0 %298
    %s301 = sor.u32 256, 8
    %302 = vbcast.lane.b32.xlu0 %v296, %s301
    %v303 = vpop.permute.xlu0 %302
    %s305 = sor.u32 256, 16
    %306 = vbcast.lane.b32.xlu0 %v296, %s305
    %v307 = vpop.permute.xlu0 %306
    %s309 = sor.u32 256, 24
    %310 = vbcast.lane.b32.xlu0 %v296, %s309
    %v311 = vpop.permute.xlu0 %310
    %s313 = sor.u32 256, 32
    %314 = vbcast.lane.b32.xlu0 %v296, %s313
    %v315 = vpop.permute.xlu0 %314
    %s317 = sor.u32 256, 40
    %318 = vbcast.lane.b32.xlu0 %v296, %s317
    %v319 = vpop.permute.xlu0 %318
    %s321 = sor.u32 256, 48
    %322 = vbcast.lane.b32.xlu0 %v296, %s321
    %v323 = vpop.permute.xlu0 %322
    %s325 = sor.u32 256, 56
    %326 = vbcast.lane.b32.xlu0 %v296, %s325
    %v327 = vpop.permute.xlu0 %326
    %s329 = sor.u32 256, 64
    %330 = vbcast.lane.b32.xlu0 %v296, %s329
    %v331 = vpop.permute.xlu0 %330
    %s333 = sor.u32 256, 72
    %334 = vbcast.lane.b32.xlu0 %v296, %s333
    %v335 = vpop.permute.xlu0 %334
    %s337 = sor.u32 256, 80
    %338 = vbcast.lane.b32.xlu0 %v296, %s337
    %v339 = vpop.permute.xlu0 %338
    %s341 = sor.u32 256, 88
    %342 = vbcast.lane.b32.xlu0 %v296, %s341
    %v343 = vpop.permute.xlu0 %342
    %s345 = sor.u32 256, 96
    %346 = vbcast.lane.b32.xlu0 %v296, %s345
    %v347 = vpop.permute.xlu0 %346
    %s349 = sor.u32 256, 104
    %350 = vbcast.lane.b32.xlu0 %v296, %s349
    %v351 = vpop.permute.xlu0 %350
    %s353 = sor.u32 256, 112
    %354 = vbcast.lane.b32.xlu0 %v296, %s353
    %v355 = vpop.permute.xlu0 %354
    %s357 = sor.u32 256, 120
    %358 = vbcast.lane.b32.xlu0 %v296, %s357
    %v359 = vpop.permute.xlu0 %358
    %v360 = vlaneseq
    %v361 = vshrl.u32 %v360, 7
    %v362 = vsub.s32 5, %v361
    %v363 = vrot.slane %v24, %v362
    %365 = vbcast.lane.b32.xlu0 %v363, 256
    %v366 = vpop.permute.xlu0 %365
    %s368 = sor.u32 256, 8
    %369 = vbcast.lane.b32.xlu0 %v363, %s368
    %v370 = vpop.permute.xlu0 %369
    %s372 = sor.u32 256, 16
    %373 = vbcast.lane.b32.xlu0 %v363, %s372
    %v374 = vpop.permute.xlu0 %373
    %s376 = sor.u32 256, 24
    %377 = vbcast.lane.b32.xlu0 %v363, %s376
    %v378 = vpop.permute.xlu0 %377
    %s380 = sor.u32 256, 32
    %381 = vbcast.lane.b32.xlu0 %v363, %s380
    %v382 = vpop.permute.xlu0 %381
    %s384 = sor.u32 256, 40
    %385 = vbcast.lane.b32.xlu0 %v363, %s384
    %v386 = vpop.permute.xlu0 %385
    %s388 = sor.u32 256, 48
    %389 = vbcast.lane.b32.xlu0 %v363, %s388
    %v390 = vpop.permute.xlu0 %389
    %s392 = sor.u32 256, 56
    %393 = vbcast.lane.b32.xlu0 %v363, %s392
    %v394 = vpop.permute.xlu0 %393
    %s396 = sor.u32 256, 64
    %397 = vbcast.lane.b32.xlu0 %v363, %s396
    %v398 = vpop.permute.xlu0 %397
    %s400 = sor.u32 256, 72
    %401 = vbcast.lane.b32.xlu0 %v363, %s400
    %v402 = vpop.permute.xlu0 %401
    %s404 = sor.u32 256, 80
    %405 = vbcast.lane.b32.xlu0 %v363, %s404
    %v406 = vpop.permute.xlu0 %405
    %s408 = sor.u32 256, 88
    %409 = vbcast.lane.b32.xlu0 %v363, %s408
    %v410 = vpop.permute.xlu0 %409
    %s412 = sor.u32 256, 96
    %413 = vbcast.lane.b32.xlu0 %v363, %s412
    %v414 = vpop.permute.xlu0 %413
    %s416 = sor.u32 256, 104
    %417 = vbcast.lane.b32.xlu0 %v363, %s416
    %v418 = vpop.permute.xlu0 %417
    %s420 = sor.u32 256, 112
    %421 = vbcast.lane.b32.xlu0 %v363, %s420
    %v422 = vpop.permute.xlu0 %421
    %s424 = sor.u32 256, 120
    %425 = vbcast.lane.b32.xlu0 %v363, %s424
    %v426 = vpop.permute.xlu0 %425
    %v427 = vlaneseq
    %v428 = vshrl.u32 %v427, 7
    %v429 = vsub.s32 6, %v428
    %v430 = vrot.slane %v24, %v429
    %432 = vbcast.lane.b32.xlu0 %v430, 256
    %v433 = vpop.permute.xlu0 %432
    %s435 = sor.u32 256, 8
    %436 = vbcast.lane.b32.xlu0 %v430, %s435
    %v437 = vpop.permute.xlu0 %436
    %s439 = sor.u32 256, 16
    %440 = vbcast.lane.b32.xlu0 %v430, %s439
    %v441 = vpop.permute.xlu0 %440
    %s443 = sor.u32 256, 24
    %444 = vbcast.lane.b32.xlu0 %v430, %s443
    %v445 = vpop.permute.xlu0 %444
    %s447 = sor.u32 256, 32
    %448 = vbcast.lane.b32.xlu0 %v430, %s447
    %v449 = vpop.permute.xlu0 %448
    %s451 = sor.u32 256, 40
    %452 = vbcast.lane.b32.xlu0 %v430, %s451
    %v453 = vpop.permute.xlu0 %452
    %s455 = sor.u32 256, 48
    %456 = vbcast.lane.b32.xlu0 %v430, %s455
    %v457 = vpop.permute.xlu0 %456
    %s459 = sor.u32 256, 56
    %460 = vbcast.lane.b32.xlu0 %v430, %s459
    %v461 = vpop.permute.xlu0 %460
    %s463 = sor.u32 256, 64
    %464 = vbcast.lane.b32.xlu0 %v430, %s463
    %v465 = vpop.permute.xlu0 %464
    %s467 = sor.u32 256, 72
    %468 = vbcast.lane.b32.xlu0 %v430, %s467
    %v469 = vpop.permute.xlu0 %468
    %s471 = sor.u32 256, 80
    %472 = vbcast.lane.b32.xlu0 %v430, %s471
    %v473 = vpop.permute.xlu0 %472
    %s475 = sor.u32 256, 88
    %476 = vbcast.lane.b32.xlu0 %v430, %s475
    %v477 = vpop.permute.xlu0 %476
    %s479 = sor.u32 256, 96
    %480 = vbcast.lane.b32.xlu0 %v430, %s479
    %v481 = vpop.permute.xlu0 %480
    %s483 = sor.u32 256, 104
    %484 = vbcast.lane.b32.xlu0 %v430, %s483
    %v485 = vpop.permute.xlu0 %484
    %s487 = sor.u32 256, 112
    %488 = vbcast.lane.b32.xlu0 %v430, %s487
    %v489 = vpop.permute.xlu0 %488
    %s491 = sor.u32 256, 120
    %492 = vbcast.lane.b32.xlu0 %v430, %s491
    %v493 = vpop.permute.xlu0 %492
    %v494 = vlaneseq
    %v495 = vshrl.u32 %v494, 7
    %v496 = vsub.s32 7, %v495
    %v497 = vrot.slane %v24, %v496
    %499 = vbcast.lane.b32.xlu0 %v497, 256
    %v500 = vpop.permute.xlu0 %499
    %s502 = sor.u32 256, 8
    %503 = vbcast.lane.b32.xlu0 %v497, %s502
    %v504 = vpop.permute.xlu0 %503
    %s506 = sor.u32 256, 16
    %507 = vbcast.lane.b32.xlu0 %v497, %s506
    %v508 = vpop.permute.xlu0 %507
    %s510 = sor.u32 256, 24
    %511 = vbcast.lane.b32.xlu0 %v497, %s510
    %v512 = vpop.permute.xlu0 %511
    %s514 = sor.u32 256, 32
    %515 = vbcast.lane.b32.xlu0 %v497, %s514
    %v516 = vpop.permute.xlu0 %515
    %s518 = sor.u32 256, 40
    %519 = vbcast.lane.b32.xlu0 %v497, %s518
    %v520 = vpop.permute.xlu0 %519
    %s522 = sor.u32 256, 48
    %523 = vbcast.lane.b32.xlu0 %v497, %s522
    %v524 = vpop.permute.xlu0 %523
    %s526 = sor.u32 256, 56
    %527 = vbcast.lane.b32.xlu0 %v497, %s526
    %v528 = vpop.permute.xlu0 %527
    %s530 = sor.u32 256, 64
    %531 = vbcast.lane.b32.xlu0 %v497, %s530
    %v532 = vpop.permute.xlu0 %531
    %s534 = sor.u32 256, 72
    %535 = vbcast.lane.b32.xlu0 %v497, %s534
    %v536 = vpop.permute.xlu0 %535
    %s538 = sor.u32 256, 80
    %539 = vbcast.lane.b32.xlu0 %v497, %s538
    %v540 = vpop.permute.xlu0 %539
    %s542 = sor.u32 256, 88
    %543 = vbcast.lane.b32.xlu0 %v497, %s542
    %v544 = vpop.permute.xlu0 %543
    %s546 = sor.u32 256, 96
    %547 = vbcast.lane.b32.xlu0 %v497, %s546
    %v548 = vpop.permute.xlu0 %547
    %s550 = sor.u32 256, 104
    %551 = vbcast.lane.b32.xlu0 %v497, %s550
    %v552 = vpop.permute.xlu0 %551
    %s554 = sor.u32 256, 112
    %555 = vbcast.lane.b32.xlu0 %v497, %s554
    %v556 = vpop.permute.xlu0 %555
    %s558 = sor.u32 256, 120
    %559 = vbcast.lane.b32.xlu0 %v497, %s558
    %v560 = vpop.permute.xlu0 %559
    %vm561 = vcmp.eq.s32.totalorder %v31, %v21
    %vm562 = vcmp.eq.s32.totalorder %v35, %v21
    %vm563 = vcmp.eq.s32.totalorder %v39, %v21
    %vm564 = vcmp.eq.s32.totalorder %v43, %v21
    %vm565 = vcmp.eq.s32.totalorder %v47, %v21
    %vm566 = vcmp.eq.s32.totalorder %v51, %v21
    %vm567 = vcmp.eq.s32.totalorder %v55, %v21
    %vm568 = vcmp.eq.s32.totalorder %v59, %v21
    %vm569 = vcmp.eq.s32.totalorder %v63, %v21
    %vm570 = vcmp.eq.s32.totalorder %v67, %v21
    %vm571 = vcmp.eq.s32.totalorder %v71, %v21
    %vm572 = vcmp.eq.s32.totalorder %v75, %v21
    %vm573 = vcmp.eq.s32.totalorder %v79, %v21
    %vm574 = vcmp.eq.s32.totalorder %v83, %v21
    %vm575 = vcmp.eq.s32.totalorder %v87, %v21
    %vm576 = vcmp.eq.s32.totalorder %v91, %v21
    %vm577 = vcmp.eq.s32.totalorder %v98, %v21
    %vm578 = vcmp.eq.s32.totalorder %v102, %v21
    %vm579 = vcmp.eq.s32.totalorder %v106, %v21
    %vm580 = vcmp.eq.s32.totalorder %v110, %v21
    %vm581 = vcmp.eq.s32.totalorder %v114, %v21
    %vm582 = vcmp.eq.s32.totalorder %v118, %v21
    %vm583 = vcmp.eq.s32.totalorder %v122, %v21
    %vm584 = vcmp.eq.s32.totalorder %v126, %v21
    %vm585 = vcmp.eq.s32.totalorder %v130, %v21
    %vm586 = vcmp.eq.s32.totalorder %v134, %v21
    %vm587 = vcmp.eq.s32.totalorder %v138, %v21
    %vm588 = vcmp.eq.s32.totalorder %v142, %v21
    %vm589 = vcmp.eq.s32.totalorder %v146, %v21
    %vm590 = vcmp.eq.s32.totalorder %v150, %v21
    %vm591 = vcmp.eq.s32.totalorder %v154, %v21
    %vm592 = vcmp.eq.s32.totalorder %v158, %v21
    %vm593 = vcmp.eq.s32.totalorder %v165, %v21
    %vm594 = vcmp.eq.s32.totalorder %v169, %v21
    %vm595 = vcmp.eq.s32.totalorder %v173, %v21
    %vm596 = vcmp.eq.s32.totalorder %v177, %v21
    %vm597 = vcmp.eq.s32.totalorder %v181, %v21
    %vm598 = vcmp.eq.s32.totalorder %v185, %v21
    %vm599 = vcmp.eq.s32.totalorder %v189, %v21
    %vm600 = vcmp.eq.s32.totalorder %v193, %v21
    %vm601 = vcmp.eq.s32.totalorder %v197, %v21
    %vm602 = vcmp.eq.s32.totalorder %v201, %v21
    %vm603 = vcmp.eq.s32.totalorder %v205, %v21
    %vm604 = vcmp.eq.s32.totalorder %v209, %v21
    %vm605 = vcmp.eq.s32.totalorder %v213, %v21
    %vm606 = vcmp.eq.s32.totalorder %v217, %v21
    %vm607 = vcmp.eq.s32.totalorder %v221, %v21
    %vm608 = vcmp.eq.s32.totalorder %v225, %v21
    %vm609 = vcmp.eq.s32.totalorder %v232, %v21
    %vm610 = vcmp.eq.s32.totalorder %v236, %v21
    %vm611 = vcmp.eq.s32.totalorder %v240, %v21
    %vm612 = vcmp.eq.s32.totalorder %v244, %v21
    %vm613 = vcmp.eq.s32.totalorder %v248, %v21
    %vm614 = vcmp.eq.s32.totalorder %v252, %v21
    %vm615 = vcmp.eq.s32.totalorder %v256, %v21
    %vm616 = vcmp.eq.s32.totalorder %v260, %v21
    %vm617 = vcmp.eq.s32.totalorder %v264, %v21
    %vm618 = vcmp.eq.s32.totalorder %v268, %v21
    %vm619 = vcmp.eq.s32.totalorder %v272, %v21
    %vm620 = vcmp.eq.s32.totalorder %v276, %v21
    %vm621 = vcmp.eq.s32.totalorder %v280, %v21
    %vm622 = vcmp.eq.s32.totalorder %v284, %v21
    %vm623 = vcmp.eq.s32.totalorder %v288, %v21
    %vm624 = vcmp.eq.s32.totalorder %v292, %v21
    %vm625 = vcmp.eq.s32.totalorder %v299, %v21
    %vm626 = vcmp.eq.s32.totalorder %v303, %v21
    %vm627 = vcmp.eq.s32.totalorder %v307, %v21
    %vm628 = vcmp.eq.s32.totalorder %v311, %v21
    %vm629 = vcmp.eq.s32.totalorder %v315, %v21
    %vm630 = vcmp.eq.s32.totalorder %v319, %v21
    %vm631 = vcmp.eq.s32.totalorder %v323, %v21
    %vm632 = vcmp.eq.s32.totalorder %v327, %v21
    %vm633 = vcmp.eq.s32.totalorder %v331, %v21
    %vm634 = vcmp.eq.s32.totalorder %v335, %v21
    %vm635 = vcmp.eq.s32.totalorder %v339, %v21
    %vm636 = vcmp.eq.s32.totalorder %v343, %v21
    %vm637 = vcmp.eq.s32.totalorder %v347, %v21
    %vm638 = vcmp.eq.s32.totalorder %v351, %v21
    %vm639 = vcmp.eq.s32.totalorder %v355, %v21
    %vm640 = vcmp.eq.s32.totalorder %v359, %v21
    %vm641 = vcmp.eq.s32.totalorder %v366, %v21
    %vm642 = vcmp.eq.s32.totalorder %v370, %v21
    %vm643 = vcmp.eq.s32.totalorder %v374, %v21
    %vm644 = vcmp.eq.s32.totalorder %v378, %v21
    %vm645 = vcmp.eq.s32.totalorder %v382, %v21
    %vm646 = vcmp.eq.s32.totalorder %v386, %v21
    %vm647 = vcmp.eq.s32.totalorder %v390, %v21
    %vm648 = vcmp.eq.s32.totalorder %v394, %v21
    %vm649 = vcmp.eq.s32.totalorder %v398, %v21
    %vm650 = vcmp.eq.s32.totalorder %v402, %v21
    %vm651 = vcmp.eq.s32.totalorder %v406, %v21
    %vm652 = vcmp.eq.s32.totalorder %v410, %v21
    %vm653 = vcmp.eq.s32.totalorder %v414, %v21
    %vm654 = vcmp.eq.s32.totalorder %v418, %v21
    %vm655 = vcmp.eq.s32.totalorder %v422, %v21
    %vm656 = vcmp.eq.s32.totalorder %v426, %v21
    %vm657 = vcmp.eq.s32.totalorder %v433, %v21
    %vm658 = vcmp.eq.s32.totalorder %v437, %v21
    %vm659 = vcmp.eq.s32.totalorder %v441, %v21
    %vm660 = vcmp.eq.s32.totalorder %v445, %v21
    %vm661 = vcmp.eq.s32.totalorder %v449, %v21
    %vm662 = vcmp.eq.s32.totalorder %v453, %v21
    %vm663 = vcmp.eq.s32.totalorder %v457, %v21
    %vm664 = vcmp.eq.s32.totalorder %v461, %v21
    %vm665 = vcmp.eq.s32.totalorder %v465, %v21
    %vm666 = vcmp.eq.s32.totalorder %v469, %v21
    %vm667 = vcmp.eq.s32.totalorder %v473, %v21
    %vm668 = vcmp.eq.s32.totalorder %v477, %v21
    %vm669 = vcmp.eq.s32.totalorder %v481, %v21
    %vm670 = vcmp.eq.s32.totalorder %v485, %v21
    %vm671 = vcmp.eq.s32.totalorder %v489, %v21
    %vm672 = vcmp.eq.s32.totalorder %v493, %v21
    %vm673 = vcmp.eq.s32.totalorder %v500, %v21
    %vm674 = vcmp.eq.s32.totalorder %v504, %v21
    %vm675 = vcmp.eq.s32.totalorder %v508, %v21
    %vm676 = vcmp.eq.s32.totalorder %v512, %v21
    %vm677 = vcmp.eq.s32.totalorder %v516, %v21
    %vm678 = vcmp.eq.s32.totalorder %v520, %v21
    %vm679 = vcmp.eq.s32.totalorder %v524, %v21
    %vm680 = vcmp.eq.s32.totalorder %v528, %v21
    %vm681 = vcmp.eq.s32.totalorder %v532, %v21
    %vm682 = vcmp.eq.s32.totalorder %v536, %v21
    %vm683 = vcmp.eq.s32.totalorder %v540, %v21
    %vm684 = vcmp.eq.s32.totalorder %v544, %v21
    %vm685 = vcmp.eq.s32.totalorder %v548, %v21
    %vm686 = vcmp.eq.s32.totalorder %v552, %v21
    %vm687 = vcmp.eq.s32.totalorder %v556, %v21
    %vm688 = vcmp.eq.s32.totalorder %v560, %v21
    %v689 = vsel %vm561, 1, 0
    %v690 = vsel %vm562, 1, 0
    %v691 = vsel %vm563, 1, 0
    %v692 = vsel %vm564, 1, 0
    %v693 = vsel %vm565, 1, 0
    %v694 = vsel %vm566, 1, 0
    %v695 = vsel %vm567, 1, 0
    %v696 = vsel %vm568, 1, 0
    %v697 = vsel %vm569, 1, 0
    %v698 = vsel %vm570, 1, 0
    %v699 = vsel %vm571, 1, 0
    %v700 = vsel %vm572, 1, 0
    %v701 = vsel %vm573, 1, 0
    %v702 = vsel %vm574, 1, 0
    %v703 = vsel %vm575, 1, 0
    %v704 = vsel %vm576, 1, 0
    %v705 = vsel %vm577, 1, 0
    %v706 = vsel %vm578, 1, 0
    %v707 = vsel %vm579, 1, 0
    %v708 = vsel %vm580, 1, 0
    %v709 = vsel %vm581, 1, 0
    %v710 = vsel %vm582, 1, 0
    %v711 = vsel %vm583, 1, 0
    %v712 = vsel %vm584, 1, 0
    %v713 = vsel %vm585, 1, 0
    %v714 = vsel %vm586, 1, 0
    %v715 = vsel %vm587, 1, 0
    %v716 = vsel %vm588, 1, 0
    %v717 = vsel %vm589, 1, 0
    %v718 = vsel %vm590, 1, 0
    %v719 = vsel %vm591, 1, 0
    %v720 = vsel %vm592, 1, 0
    %v721 = vsel %vm593, 1, 0
    %v722 = vsel %vm594, 1, 0
    %v723 = vsel %vm595, 1, 0
    %v724 = vsel %vm596, 1, 0
    %v725 = vsel %vm597, 1, 0
    %v726 = vsel %vm598, 1, 0
    %v727 = vsel %vm599, 1, 0
    %v728 = vsel %vm600, 1, 0
    %v729 = vsel %vm601, 1, 0
    %v730 = vsel %vm602, 1, 0
    %v731 = vsel %vm603, 1, 0
    %v732 = vsel %vm604, 1, 0
    %v733 = vsel %vm605, 1, 0
    %v734 = vsel %vm606, 1, 0
    %v735 = vsel %vm607, 1, 0
    %v736 = vsel %vm608, 1, 0
    %v737 = vsel %vm609, 1, 0
    %v738 = vsel %vm610, 1, 0
    %v739 = vsel %vm611, 1, 0
    %v740 = vsel %vm612, 1, 0
    %v741 = vsel %vm613, 1, 0
    %v742 = vsel %vm614, 1, 0
    %v743 = vsel %vm615, 1, 0
    %v744 = vsel %vm616, 1, 0
    %v745 = vsel %vm617, 1, 0
    %v746 = vsel %vm618, 1, 0
    %v747 = vsel %vm619, 1, 0
    %v748 = vsel %vm620, 1, 0
    %v749 = vsel %vm621, 1, 0
    %v750 = vsel %vm622, 1, 0
    %v751 = vsel %vm623, 1, 0
    %v752 = vsel %vm624, 1, 0
    %v753 = vsel %vm625, 1, 0
    %v754 = vsel %vm626, 1, 0
    %v755 = vsel %vm627, 1, 0
    %v756 = vsel %vm628, 1, 0
    %v757 = vsel %vm629, 1, 0
    %v758 = vsel %vm630, 1, 0
    %v759 = vsel %vm631, 1, 0
    %v760 = vsel %vm632, 1, 0
    %v761 = vsel %vm633, 1, 0
    %v762 = vsel %vm634, 1, 0
    %v763 = vsel %vm635, 1, 0
    %v764 = vsel %vm636, 1, 0
    %v765 = vsel %vm637, 1, 0
    %v766 = vsel %vm638, 1, 0
    %v767 = vsel %vm639, 1, 0
    %v768 = vsel %vm640, 1, 0
    %v769 = vsel %vm641, 1, 0
    %v770 = vsel %vm642, 1, 0
    %v771 = vsel %vm643, 1, 0
    %v772 = vsel %vm644, 1, 0
    %v773 = vsel %vm645, 1, 0
    %v774 = vsel %vm646, 1, 0
    %v775 = vsel %vm647, 1, 0
    %v776 = vsel %vm648, 1, 0
    %v777 = vsel %vm649, 1, 0
    %v778 = vsel %vm650, 1, 0
    %v779 = vsel %vm651, 1, 0
    %v780 = vsel %vm652, 1, 0
    %v781 = vsel %vm653, 1, 0
    %v782 = vsel %vm654, 1, 0
    %v783 = vsel %vm655, 1, 0
    %v784 = vsel %vm656, 1, 0
    %v785 = vsel %vm657, 1, 0
    %v786 = vsel %vm658, 1, 0
    %v787 = vsel %vm659, 1, 0
    %v788 = vsel %vm660, 1, 0
    %v789 = vsel %vm661, 1, 0
    %v790 = vsel %vm662, 1, 0
    %v791 = vsel %vm663, 1, 0
    %v792 = vsel %vm664, 1, 0
    %v793 = vsel %vm665, 1, 0
    %v794 = vsel %vm666, 1, 0
    %v795 = vsel %vm667, 1, 0
    %v796 = vsel %vm668, 1, 0
    %v797 = vsel %vm669, 1, 0
    %v798 = vsel %vm670, 1, 0
    %v799 = vsel %vm671, 1, 0
    %v800 = vsel %vm672, 1, 0
    %v801 = vsel %vm673, 1, 0
    %v802 = vsel %vm674, 1, 0
    %v803 = vsel %vm675, 1, 0
    %v804 = vsel %vm676, 1, 0
    %v805 = vsel %vm677, 1, 0
    %v806 = vsel %vm678, 1, 0
    %v807 = vsel %vm679, 1, 0
    %v808 = vsel %vm680, 1, 0
    %v809 = vsel %vm681, 1, 0
    %v810 = vsel %vm682, 1, 0
    %v811 = vsel %vm683, 1, 0
    %v812 = vsel %vm684, 1, 0
    %v813 = vsel %vm685, 1, 0
    %v814 = vsel %vm686, 1, 0
    %v815 = vsel %vm687, 1, 0
    %v816 = vsel %vm688, 1, 0
    %vm817 = vcmask 785408
    %v818 = vsel %vm817, %v689, 0
    %v819 = vsel %vm817, %v690, 0
    %v820 = vadd.s32 %v818, %v819
    %v821 = vsel %vm817, %v691, 0
    %v822 = vadd.s32 %v820, %v821
    %v823 = vsel %vm817, %v692, 0
    %v824 = vadd.s32 %v822, %v823
    %v825 = vsel %vm817, %v693, 0
    %v826 = vadd.s32 %v824, %v825
    %v827 = vsel %vm817, %v694, 0
    %v828 = vadd.s32 %v826, %v827
    %v829 = vsel %vm817, %v695, 0
    %v830 = vadd.s32 %v828, %v829
    %v831 = vsel %vm817, %v696, 0
    %v832 = vadd.s32 %v830, %v831
    %v833 = vsel %vm817, %v697, 0
    %v834 = vadd.s32 %v832, %v833
    %v835 = vsel %vm817, %v698, 0
    %v836 = vadd.s32 %v834, %v835
    %v837 = vsel %vm817, %v699, 0
    %v838 = vadd.s32 %v836, %v837
    %v839 = vsel %vm817, %v700, 0
    %v840 = vadd.s32 %v838, %v839
    %v841 = vsel %vm817, %v701, 0
    %v842 = vadd.s32 %v840, %v841
    %v843 = vsel %vm817, %v702, 0
    %v844 = vadd.s32 %v842, %v843
    %v845 = vsel %vm817, %v703, 0
    %v846 = vadd.s32 %v844, %v845
    %v847 = vsel %vm817, %v704, 0
    %v848 = vadd.s32 %v846, %v847
    %v849 = vrot.slane %v848, 4
    %v850 = vadd.s32 %v848, %v849
    %v851 = vrot.slane %v850, 2
    %v852 = vadd.s32 %v850, %v851
    %v853 = vrot.slane %v852, 1
    %v854 = vadd.s32 %v852, %v853
    %v855 = vsel %vm817, %v705, 0
    %v856 = vsel %vm817, %v706, 0
    %v857 = vadd.s32 %v855, %v856
    %v858 = vsel %vm817, %v707, 0
    %v859 = vadd.s32 %v857, %v858
    %v860 = vsel %vm817, %v708, 0
    %v861 = vadd.s32 %v859, %v860
    %v862 = vsel %vm817, %v709, 0
    %v863 = vadd.s32 %v861, %v862
    %v864 = vsel %vm817, %v710, 0
    %v865 = vadd.s32 %v863, %v864
    %v866 = vsel %vm817, %v711, 0
    %v867 = vadd.s32 %v865, %v866
    %v868 = vsel %vm817, %v712, 0
    %v869 = vadd.s32 %v867, %v868
    %v870 = vsel %vm817, %v713, 0
    %v871 = vadd.s32 %v869, %v870
    %v872 = vsel %vm817, %v714, 0
    %v873 = vadd.s32 %v871, %v872
    %v874 = vsel %vm817, %v715, 0
    %v875 = vadd.s32 %v873, %v874
    %v876 = vsel %vm817, %v716, 0
    %v877 = vadd.s32 %v875, %v876
    %v878 = vsel %vm817, %v717, 0
    %v879 = vadd.s32 %v877, %v878
    %v880 = vsel %vm817, %v718, 0
    %v881 = vadd.s32 %v879, %v880
    %v882 = vsel %vm817, %v719, 0
    %v883 = vadd.s32 %v881, %v882
    %v884 = vsel %vm817, %v720, 0
    %v885 = vadd.s32 %v883, %v884
    %v886 = vrot.slane %v885, 4
    %v887 = vadd.s32 %v885, %v886
    %v888 = vrot.slane %v887, 2
    %v889 = vadd.s32 %v887, %v888
    %v890 = vrot.slane %v889, 1
    %v891 = vadd.s32 %v889, %v890
    %v892 = vsel %vm817, %v721, 0
    %v893 = vsel %vm817, %v722, 0
    %v894 = vadd.s32 %v892, %v893
    %v895 = vsel %vm817, %v723, 0
    %v896 = vadd.s32 %v894, %v895
    %v897 = vsel %vm817, %v724, 0
    %v898 = vadd.s32 %v896, %v897
    %v899 = vsel %vm817, %v725, 0
    %v900 = vadd.s32 %v898, %v899
    %v901 = vsel %vm817, %v726, 0
    %v902 = vadd.s32 %v900, %v901
    %v903 = vsel %vm817, %v727, 0
    %v904 = vadd.s32 %v902, %v903
    %v905 = vsel %vm817, %v728, 0
    %v906 = vadd.s32 %v904, %v905
    %v907 = vsel %vm817, %v729, 0
    %v908 = vadd.s32 %v906, %v907
    %v909 = vsel %vm817, %v730, 0
    %v910 = vadd.s32 %v908, %v909
    %v911 = vsel %vm817, %v731, 0
    %v912 = vadd.s32 %v910, %v911
    %v913 = vsel %vm817, %v732, 0
    %v914 = vadd.s32 %v912, %v913
    %v915 = vsel %vm817, %v733, 0
    %v916 = vadd.s32 %v914, %v915
    %v917 = vsel %vm817, %v734, 0
    %v918 = vadd.s32 %v916, %v917
    %v919 = vsel %vm817, %v735, 0
    %v920 = vadd.s32 %v918, %v919
    %v921 = vsel %vm817, %v736, 0
    %v922 = vadd.s32 %v920, %v921
    %v923 = vrot.slane %v922, 4
    %v924 = vadd.s32 %v922, %v923
    %v925 = vrot.slane %v924, 2
    %v926 = vadd.s32 %v924, %v925
    %v927 = vrot.slane %v926, 1
    %v928 = vadd.s32 %v926, %v927
    %v929 = vsel %vm817, %v737, 0
    %v930 = vsel %vm817, %v738, 0
    %v931 = vadd.s32 %v929, %v930
    %v932 = vsel %vm817, %v739, 0
    %v933 = vadd.s32 %v931, %v932
    %v934 = vsel %vm817, %v740, 0
    %v935 = vadd.s32 %v933, %v934
    %v936 = vsel %vm817, %v741, 0
    %v937 = vadd.s32 %v935, %v936
    %v938 = vsel %vm817, %v742, 0
    %v939 = vadd.s32 %v937, %v938
    %v940 = vsel %vm817, %v743, 0
    %v941 = vadd.s32 %v939, %v940
    %v942 = vsel %vm817, %v744, 0
    %v943 = vadd.s32 %v941, %v942
    %v944 = vsel %vm817, %v745, 0
    %v945 = vadd.s32 %v943, %v944
    %v946 = vsel %vm817, %v746, 0
    %v947 = vadd.s32 %v945, %v946
    %v948 = vsel %vm817, %v747, 0
    %v949 = vadd.s32 %v947, %v948
    %v950 = vsel %vm817, %v748, 0
    %v951 = vadd.s32 %v949, %v950
    %v952 = vsel %vm817, %v749, 0
    %v953 = vadd.s32 %v951, %v952
    %v954 = vsel %vm817, %v750, 0
    %v955 = vadd.s32 %v953, %v954
    %v956 = vsel %vm817, %v751, 0
    %v957 = vadd.s32 %v955, %v956
    %v958 = vsel %vm817, %v752, 0
    %v959 = vadd.s32 %v957, %v958
    %v960 = vrot.slane %v959, 4
    %v961 = vadd.s32 %v959, %v960
    %v962 = vrot.slane %v961, 2
    %v963 = vadd.s32 %v961, %v962
    %v964 = vrot.slane %v963, 1
    %v965 = vadd.s32 %v963, %v964
    %v966 = vsel %vm817, %v753, 0
    %v967 = vsel %vm817, %v754, 0
    %v968 = vadd.s32 %v966, %v967
    %v969 = vsel %vm817, %v755, 0
    %v970 = vadd.s32 %v968, %v969
    %v971 = vsel %vm817, %v756, 0
    %v972 = vadd.s32 %v970, %v971
    %v973 = vsel %vm817, %v757, 0
    %v974 = vadd.s32 %v972, %v973
    %v975 = vsel %vm817, %v758, 0
    %v976 = vadd.s32 %v974, %v975
    %v977 = vsel %vm817, %v759, 0
    %v978 = vadd.s32 %v976, %v977
    %v979 = vsel %vm817, %v760, 0
    %v980 = vadd.s32 %v978, %v979
    %v981 = vsel %vm817, %v761, 0
    %v982 = vadd.s32 %v980, %v981
    %v983 = vsel %vm817, %v762, 0
    %v984 = vadd.s32 %v982, %v983
    %v985 = vsel %vm817, %v763, 0
    %v986 = vadd.s32 %v984, %v985
    %v987 = vsel %vm817, %v764, 0
    %v988 = vadd.s32 %v986, %v987
    %v989 = vsel %vm817, %v765, 0
    %v990 = vadd.s32 %v988, %v989
    %v991 = vsel %vm817, %v766, 0
    %v992 = vadd.s32 %v990, %v991
    %v993 = vsel %vm817, %v767, 0
    %v994 = vadd.s32 %v992, %v993
    %v995 = vsel %vm817, %v768, 0
    %v996 = vadd.s32 %v994, %v995
    %v997 = vrot.slane %v996, 4
    %v998 = vadd.s32 %v996, %v997
    %v999 = vrot.slane %v998, 2
    %v1000 = vadd.s32 %v998, %v999
    %v1001 = vrot.slane %v1000, 1
    %v1002 = vadd.s32 %v1000, %v1001
    %v1003 = vsel %vm817, %v769, 0
    %v1004 = vsel %vm817, %v770, 0
    %v1005 = vadd.s32 %v1003, %v1004
    %v1006 = vsel %vm817, %v771, 0
    %v1007 = vadd.s32 %v1005, %v1006
    %v1008 = vsel %vm817, %v772, 0
    %v1009 = vadd.s32 %v1007, %v1008
    %v1010 = vsel %vm817, %v773, 0
    %v1011 = vadd.s32 %v1009, %v1010
    %v1012 = vsel %vm817, %v774, 0
    %v1013 = vadd.s32 %v1011, %v1012
    %v1014 = vsel %vm817, %v775, 0
    %v1015 = vadd.s32 %v1013, %v1014
    %v1016 = vsel %vm817, %v776, 0
    %v1017 = vadd.s32 %v1015, %v1016
    %v1018 = vsel %vm817, %v777, 0
    %v1019 = vadd.s32 %v1017, %v1018
    %v1020 = vsel %vm817, %v778, 0
    %v1021 = vadd.s32 %v1019, %v1020
    %v1022 = vsel %vm817, %v779, 0
    %v1023 = vadd.s32 %v1021, %v1022
    %v1024 = vsel %vm817, %v780, 0
    %v1025 = vadd.s32 %v1023, %v1024
    %v1026 = vsel %vm817, %v781, 0
    %v1027 = vadd.s32 %v1025, %v1026
    %v1028 = vsel %vm817, %v782, 0
    %v1029 = vadd.s32 %v1027, %v1028
    %v1030 = vsel %vm817, %v783, 0
    %v1031 = vadd.s32 %v1029, %v1030
    %v1032 = vsel %vm817, %v784, 0
    %v1033 = vadd.s32 %v1031, %v1032
    %v1034 = vrot.slane %v1033, 4
    %v1035 = vadd.s32 %v1033, %v1034
    %v1036 = vrot.slane %v1035, 2
    %v1037 = vadd.s32 %v1035, %v1036
    %v1038 = vrot.slane %v1037, 1
    %v1039 = vadd.s32 %v1037, %v1038
    %v1040 = vsel %vm817, %v785, 0
    %v1041 = vsel %vm817, %v786, 0
    %v1042 = vadd.s32 %v1040, %v1041
    %v1043 = vsel %vm817, %v787, 0
    %v1044 = vadd.s32 %v1042, %v1043
    %v1045 = vsel %vm817, %v788, 0
    %v1046 = vadd.s32 %v1044, %v1045
    %v1047 = vsel %vm817, %v789, 0
    %v1048 = vadd.s32 %v1046, %v1047
    %v1049 = vsel %vm817, %v790, 0
    %v1050 = vadd.s32 %v1048, %v1049
    %v1051 = vsel %vm817, %v791, 0
    %v1052 = vadd.s32 %v1050, %v1051
    %v1053 = vsel %vm817, %v792, 0
    %v1054 = vadd.s32 %v1052, %v1053
    %v1055 = vsel %vm817, %v793, 0
    %v1056 = vadd.s32 %v1054, %v1055
    %v1057 = vsel %vm817, %v794, 0
    %v1058 = vadd.s32 %v1056, %v1057
    %v1059 = vsel %vm817, %v795, 0
    %v1060 = vadd.s32 %v1058, %v1059
    %v1061 = vsel %vm817, %v796, 0
    %v1062 = vadd.s32 %v1060, %v1061
    %v1063 = vsel %vm817, %v797, 0
    %v1064 = vadd.s32 %v1062, %v1063
    %v1065 = vsel %vm817, %v798, 0
    %v1066 = vadd.s32 %v1064, %v1065
    %v1067 = vsel %vm817, %v799, 0
    %v1068 = vadd.s32 %v1066, %v1067
    %v1069 = vsel %vm817, %v800, 0
    %v1070 = vadd.s32 %v1068, %v1069
    %v1071 = vrot.slane %v1070, 4
    %v1072 = vadd.s32 %v1070, %v1071
    %v1073 = vrot.slane %v1072, 2
    %v1074 = vadd.s32 %v1072, %v1073
    %v1075 = vrot.slane %v1074, 1
    %v1076 = vadd.s32 %v1074, %v1075
    %v1077 = vsel %vm817, %v801, 0
    %v1078 = vsel %vm817, %v802, 0
    %v1079 = vadd.s32 %v1077, %v1078
    %v1080 = vsel %vm817, %v803, 0
    %v1081 = vadd.s32 %v1079, %v1080
    %v1082 = vsel %vm817, %v804, 0
    %v1083 = vadd.s32 %v1081, %v1082
    %v1084 = vsel %vm817, %v805, 0
    %v1085 = vadd.s32 %v1083, %v1084
    %v1086 = vsel %vm817, %v806, 0
    %v1087 = vadd.s32 %v1085, %v1086
    %v1088 = vsel %vm817, %v807, 0
    %v1089 = vadd.s32 %v1087, %v1088
    %v1090 = vsel %vm817, %v808, 0
    %v1091 = vadd.s32 %v1089, %v1090
    %v1092 = vsel %vm817, %v809, 0
    %v1093 = vadd.s32 %v1091, %v1092
    %v1094 = vsel %vm817, %v810, 0
    %v1095 = vadd.s32 %v1093, %v1094
    %v1096 = vsel %vm817, %v811, 0
    %v1097 = vadd.s32 %v1095, %v1096
    %v1098 = vsel %vm817, %v812, 0
    %v1099 = vadd.s32 %v1097, %v1098
    %v1100 = vsel %vm817, %v813, 0
    %v1101 = vadd.s32 %v1099, %v1100
    %v1102 = vsel %vm817, %v814, 0
    %v1103 = vadd.s32 %v1101, %v1102
    %v1104 = vsel %vm817, %v815, 0
    %v1105 = vadd.s32 %v1103, %v1104
    %v1106 = vsel %vm817, %v816, 0
    %v1107 = vadd.s32 %v1105, %v1106
    %v1108 = vrot.slane %v1107, 4
    %v1109 = vadd.s32 %v1107, %v1108
    %v1110 = vrot.slane %v1109, 2
    %v1111 = vadd.s32 %v1109, %v1110
    %v1112 = vrot.slane %v1111, 1
    %v1113 = vadd.s32 %v1111, %v1112
    %v1114 = vadd.s32 %v21, %v23
    %vm1115 = vcmp.lt.s32.totalorder %v1114, 64
    %v1116 = vsel %vm1115, 0.010416667, 0.03125
    %v1117 = vcvt.s32.f32 %v854
    %v1118 = vcvt.s32.f32 %v891
    %v1119 = vcvt.s32.f32 %v928
    %v1120 = vcvt.s32.f32 %v965
    %v1121 = vcvt.s32.f32 %v1002
    %v1122 = vcvt.s32.f32 %v1039
    %v1123 = vcvt.s32.f32 %v1076
    %v1124 = vcvt.s32.f32 %v1113
    %v1125 = vmul.f32 %v1117, %v1116
    %v1126 = vmul.f32 %v1118, %v1116
    %v1127 = vmul.f32 %v1119, %v1116
    %v1128 = vmul.f32 %v1120, %v1116
    %v1129 = vmul.f32 %v1121, %v1116
    %v1130 = vmul.f32 %v1122, %v1116
    %v1131 = vmul.f32 %v1123, %v1116
    %v1132 = vmul.f32 %v1124, %v1116
    %v1133 = vpack.c.bf16 %v1125, %v1125
    %v1134 = vpack.c.bf16 %v1126, %v1126
    %v1135 = vpack.c.bf16 %v1127, %v1127
    %v1136 = vpack.c.bf16 %v1128, %v1128
    %v1137 = vpack.c.bf16 %v1129, %v1129
    %v1138 = vpack.c.bf16 %v1130, %v1130
    %v1139 = vpack.c.bf16 %v1131, %v1131
    %v1140 = vpack.c.bf16 %v1132, %v1132
    %v1141 = vld [vmem:[#allocation2] sm:$0xff]
    %v1142 = vld [vmem:[%s1] sm:$0xf]
    %v1143 = vld [vmem:[%s1 + $0x4] sm:$0xf]
    %v1144 = vld [vmem:[%s1 + $0x8] sm:$0xf]
    %v1145 = vld [vmem:[%s1 + $0xc] sm:$0xf]
    %v1146 = vld [vmem:[%s1 + $0x10] sm:$0xf]
    %v1147 = vld [vmem:[%s1 + $0x14] sm:$0xf]
    %v1148 = vld [vmem:[%s1 + $0x18] sm:$0xf]
    %v1149 = vld [vmem:[%s1 + $0x1c] sm:$0xf]
    %v1150 = vld [vmem:[%s1 + $0x20] sm:$0xf]
    %v1151 = vld [vmem:[%s1 + $0x24] sm:$0xf]
    %v1152 = vld [vmem:[%s1 + $0x28] sm:$0xf]
    %v1153 = vld [vmem:[%s1 + $0x2c] sm:$0xf]
    %v1162 = vunpack.c.l.b16 %v1133
    %v1163 = vunpack.c.l.b16 %v1134
    %v1164 = vunpack.c.l.b16 %v1135
    %v1165 = vunpack.c.l.b16 %v1136
    %v1166 = vunpack.c.l.b16 %v1137
    %v1167 = vunpack.c.l.b16 %v1138
    %v1168 = vunpack.c.l.b16 %v1139
    %v1169 = vunpack.c.l.b16 %v1140
    %v1170 = vrot.slane %v1163, 7
    %vm1171 = vcmask 1041409
    %v1172 = vsel %vm1171, %v1170, %v1162
    %v1173 = vrot.slane %v1164, 6
    %vm1174 = vcmask 1042434
    %v1175 = vsel %vm1174, %v1173, %v1172
    %v1176 = vrot.slane %v1165, 5
    %vm1177 = vcmask 1043459
    %v1178 = vsel %vm1177, %v1176, %v1175
    %v1179 = vrot.slane %v1166, 4
    %vm1180 = vcmask 1044484
    %v1181 = vsel %vm1180, %v1179, %v1178
    %v1182 = vrot.slane %v1167, 3
    %vm1183 = vcmask 1045509
    %v1184 = vsel %vm1183, %v1182, %v1181
    %v1185 = vrot.slane %v1168, 2
    %vm1186 = vcmask 1046534
    %v1187 = vsel %vm1186, %v1185, %v1184
    %v1188 = vrot.slane %v1169, 1
    %vm1189 = vcmask 1047559
    %v1190 = vsel %vm1189, %v1188, %v1187
    %v1191 = vpack.c.b16 %v1190, %v1190
    %v1204 = vunpack.c.l.b16 %v1142
    %v1205 = vunpack.c.l.b16 %v1143
    %v1206 = vunpack.c.l.b16 %v1144
    %v1207 = vunpack.c.l.b16 %v1145
    %v1208 = vunpack.c.l.b16 %v1146
    %v1209 = vunpack.c.l.b16 %v1147
    %v1210 = vunpack.c.l.b16 %v1148
    %v1211 = vunpack.c.l.b16 %v1149
    %v1212 = vunpack.c.l.b16 %v1150
    %v1213 = vunpack.c.l.b16 %v1151
    %v1214 = vunpack.c.l.b16 %v1152
    %v1215 = vunpack.c.l.b16 %v1153
    %v1216 = vpack.c.b16 %v1205, %v1204
    %v1217 = vpack.c.b16 %v1207, %v1206
    %v1218 = vpack.c.b16 %v1209, %v1208
    %v1219 = vpack.c.b16 %v1211, %v1210
    %v1220 = vpack.c.b16 %v1213, %v1212
    %v1221 = vpack.c.b16 %v1215, %v1214
    %v1229 = vsel %vm817, %v1191, 0
    %1231 = vmatprep.subr.bf16.mxu0 0
    %1232 = vmatpush1.bf16.msra.mxu0 %v1216
    %1233 = vmatprep.subr.bf16.mxu0 0
    %1234 = vmatpush1.bf16.msra.mxu0 %v1217
    %1235 = vmatprep.subr.bf16.mxu0 0
    %1236 = vmatpush1.bf16.msra.mxu0 %v1218
    %1237 = vmatprep.subr.bf16.mxu0 0
    %1238 = vmatpush1.bf16.msra.mxu0 %v1219
    %1239 = vmatprep.subr.bf16.mxu0 0
    %1240 = vmatpush1.bf16.msra.mxu0 %v1220
    %1241 = vmatprep.subr.bf16.mxu0 0
    %1242 = vmatpush1.bf16.msra.mxu0 %v1221
    %1243 = vmatprep.subr.bf16.mxu0 0
    %1244 = vmatpush1.bf16.msra.mxu0 0
    %1245 = vmatprep.subr.bf16.mxu0 0
    %1246 = vmatpush1.bf16.msra.mxu0 0
    %1247 = vmatprep.subr.bf16.mxu0 0
    %1248 = vmatpush1.bf16.msra.mxu0 0
    %1249 = vmatprep.subr.bf16.mxu0 0
    %1250 = vmatpush1.bf16.msra.mxu0 0
    %1251 = vmatprep.subr.bf16.mxu0 0
    %1252 = vmatpush1.bf16.msra.mxu0 0
    %1253 = vmatprep.subr.bf16.mxu0 0
    %1254 = vmatpush1.bf16.msra.mxu0 0
    %1255 = vmatprep.subr.bf16.mxu0 0
    %1256 = vmatpush1.bf16.msra.mxu0 0
    %1257 = vmatprep.subr.bf16.mxu0 0
    %1258 = vmatpush1.bf16.msra.mxu0 0
    %1259 = vmatprep.subr.bf16.mxu0 0
    %1260 = vmatpush1.bf16.msra.mxu0 0
    %1261 = vmatprep.subr.bf16.mxu0 0
    %1262 = vmatpush1.bf16.msra.mxu0 0
    %1263 = vmatprep.mubr.bf16.mxu0 0
    %1264 = vmatmul.mubr.bf16.gmra.mrb[0].mxu0 %v1229
    %v1265 = vpop.f32.mrb[0].mxu0
    %v1266 = vadd.f32 0.0, %v1265
    %v1267 = vpop.f32.mrb[0].mxu0
    %v1268 = vpop.f32.mrb[0].mxu0
    %v1269 = vpop.f32.mrb[0].mxu0
    %1270 = vdwg.mxu0
    %v1271 = vadd.f32 %v1141, %v1266
    %vm1272 = vcmask 261120
    %1273 = vst.msk [vmem:[#allocation2] sm:$0xff] %vm1272, %v1271
    // Predicated region
    $region14: #{tpu_custom_call.1} parent=1 // pred_check
      _
    $region15: #{tpu_custom_call.1} parent=1 // pred_check_branch
      %1275 = sbr.rel (0) target = $region17
    $region16: #{tpu_custom_call.1} parent=1 // pred_region
      %s1277 = ssub.s32 128, 128
      %1278 = vsyncadd [#allocation3], %s1277
      %s1280 = sshll.u32 [#allocation2], 4
      %s1281 = int_to_ptr.vmem [resolvable:$true] %s1280
      %1283 = dma.vmem_to_hbm [thread:$0]  %s1281, 128, %s2, [#allocation3]
    $region17: #{tpu_custom_call.1} parent=1 // pred_fallthru
      _
    // Predicated region
    $region18: #{tpu_custom_call.1} parent=1 // pred_check
      _
    $region19: #{tpu_custom_call.1} parent=1 // pred_check_branch
      %1285 = sbr.rel (0) target = $region21
    $region20: #{tpu_custom_call.1} parent=1 // pred_region
      %1286 = dma.done [#allocation3], 128
    $region21: #{tpu_custom_call.1} parent=1 // pred_fallthru
      _
    %1287 = vsyncpa [#allocation3], 1

</llo_original>
